<compile_context>
chip_gen: v6e
topology: v6e:2x2x1
jax: 0.10.0
libtpu: 0.0.40
codegen_flags: <defaults>
</compile_context>

<pallas_src>
import functools
import numpy as np
import jax
import jax.numpy as jnp
from jax.experimental import pallas as pl
from jax.experimental.pallas import tpu as pltpu


# ----------------------------------------------------------------------------
# Deterministic parameter construction (librosa-style mel filterbank, Slaney
# mel scale + Slaney normalization, htk=False — same as librosa_mel_fn).
# ----------------------------------------------------------------------------
def _hz_to_mel(f):
    f = np.asarray(f, dtype=np.float64)
    f_sp = 200.0 / 3
    mels = f / f_sp
    min_log_hz = 1000.0
    min_log_mel = min_log_hz / f_sp
    logstep = np.log(6.4) / 27.0
    if np.ndim(f) == 0:
        if f >= min_log_hz:
            mels = min_log_mel + np.log(f / min_log_hz) / logstep
    else:
        log_t = f >= min_log_hz
        mels = np.where(
            log_t,
            min_log_mel + np.log(np.maximum(f, 1e-12) / min_log_hz) / logstep,
            mels,
        )
    return mels


def _mel_to_hz(m):
    m = np.asarray(m, dtype=np.float64)
    f_sp = 200.0 / 3
    freqs = f_sp * m
    min_log_hz = 1000.0
    min_log_mel = min_log_hz / f_sp
    logstep = np.log(6.4) / 27.0
    log_t = m >= min_log_mel
    freqs = np.where(log_t, min_log_hz * np.exp(logstep * (m - min_log_mel)), freqs)
    return freqs


def mel_filterbank(sr, n_fft, n_mels, fmin=0.0, fmax=None):
    if fmax is None:
        fmax = sr / 2.0
    n_freq = n_fft // 2 + 1
    fftfreqs = np.linspace(0.0, sr / 2.0, n_freq)
    mel_f = _mel_to_hz(np.linspace(_hz_to_mel(fmin), _hz_to_mel(fmax), n_mels + 2))
    fdiff = np.diff(mel_f)
    ramps = mel_f[:, None] - fftfreqs[None, :]
    weights = np.zeros((n_mels, n_freq), dtype=np.float64)
    for i in range(n_mels):
        lower = -ramps[i] / fdiff[i]
        upper = ramps[i + 2] / fdiff[i + 1]
        weights[i] = np.maximum(0.0, np.minimum(lower, upper))
    enorm = 2.0 / (mel_f[2: n_mels + 2] - mel_f[:n_mels])
    weights *= enorm[:, None]
    return weights.astype(np.float32)


def hann_window_periodic(win_length):
    n = np.arange(win_length, dtype=np.float64)
    return 0.5 - 0.5 * np.cos(2.0 * np.pi * n / win_length)


def dft_matrices(n_fft):
    """Real/imag DFT matrices for the one-sided spectrum: [n_fft, n_fft//2+1]."""
    n_freq = n_fft // 2 + 1
    n = np.arange(n_fft, dtype=np.float64)[:, None]
    k = np.arange(n_freq, dtype=np.float64)[None, :]
    ang = 2.0 * np.pi * n * k / n_fft
    return np.cos(ang), -np.sin(ang)  # imag part of exp(-i*ang)


def _round_up(x, m):
    return ((x + m - 1) // m) * m


# ----------------------------------------------------------------------------
# VMEM budgeting helpers.
# ----------------------------------------------------------------------------
def _vmem_capacity_bytes():
    try:
        info = pltpu.get_tpu_info()
        cap = getattr(info, "vmem_capacity_bytes", None)
        if cap:
            return int(cap)
    except Exception:
        pass
    return 64 * 1024 * 1024  # conservative default (v7x per-core VMEM)


def _vmem_bytes_per_step(tf, ratio, chunk_len, n_fft, n_freq_pad, n_mel_pad,
                         itemsize, const_bufs):
    """Per-grid-step VMEM estimate (blocks + in-kernel temporaries)."""
    r8 = lambda v: _round_up(v, 8)
    l128 = lambda v: _round_up(v, 128)
    rows = tf + ratio - 1
    chunk_blk = 2 * r8(rows) * l128(chunk_len) * 4            # double-buffered input
    wdft_blk = const_bufs * r8(n_fft) * (2 * n_freq_pad) * itemsize
    melt_blk = const_bufs * r8(n_freq_pad) * n_mel_pad * itemsize
    out_blk = 2 * r8(tf) * n_mel_pad * 4                      # double-buffered output
    inter = (r8(tf) * l128(n_fft) * (4 + itemsize)            # f32 frames + cast
             + r8(tf) * 2 * n_freq_pad * 4                    # acc [real|imag]
             + 3 * r8(tf) * n_freq_pad * 4                    # real, imag, mag
             + r8(tf) * n_freq_pad * itemsize                 # mag cast
             + 2 * r8(tf) * n_mel_pad * 4)                    # mel, log-mel
    return chunk_blk + wdft_blk + melt_blk + out_blk + inter


# ----------------------------------------------------------------------------
# Pallas kernel: one (batch*channel, frame-tile) grid step.
# ----------------------------------------------------------------------------
def _audio2mel_kernel(chunks_ref, wdft_ref, melT_ref, o_ref, *,
                      frame_tile, ratio, n_freq_pad, clamp, matmul_dtype):
    # chunks_ref: (1, 1, frame_tile + ratio - 1, chunk_len) halo'd hop-rows
    # wdft_ref  : (n_fft, 2*n_freq_pad)   [win*cos | win*sin], freq lane-padded
    # melT_ref  : (n_freq_pad, n_mel_pad) mel_basis.T, zero-padded
    # o_ref     : (1, frame_tile, n_mel_pad)
    #
    # Rebuild the lane-dense (frame_tile, n_fft) frame matrix from the hop rows
    # (ratio sublane-shifted slices + one lane concat) so the STFT is a single
    # K=n_fft MXU matmul instead of `ratio` K=hop matmuls.
    pieces = [chunks_ref[0, 0, pl.ds(j, frame_tile), :] for j in range(ratio)]
    frames = pieces[0] if ratio == 1 else jnp.concatenate(pieces, axis=-1)
    frames = frames.astype(matmul_dtype)

    acc = jnp.dot(frames, wdft_ref[...], preferred_element_type=jnp.float32)
    real = acc[:, :n_freq_pad]
    imag = acc[:, n_freq_pad:]
    mag = jnp.sqrt(real * real + imag * imag)          # padded bins stay exactly 0
    mel = jnp.dot(mag.astype(matmul_dtype), melT_ref[...],
                  preferred_element_type=jnp.float32)
    o_ref[0] = jnp.log10(jnp.maximum(mel, clamp))


# ----------------------------------------------------------------------------
# Wrapper.
# ----------------------------------------------------------------------------
def audio2mel(audio, *, hop_length, sampling_rate, n_mel_channels, win_length,
              n_fft=None, mel_fmin=0.0, mel_fmax=None, clamp=1e-5,
              keyshift=0, speed=1, matmul_dtype=jnp.bfloat16,
              frame_tile=256, single_buffer_constants=True):
    """audio: (B, C, T) float32 -> (B, T_, C, n_mel) [C squeezed if C == 1]."""
    n_fft = win_length if n_fft is None else n_fft
    B, C, T = audio.shape
    BC = B * C

    factor = 2.0 ** (keyshift / 12.0)
    n_fft_new = int(np.round(n_fft * factor))
    win_length_new = int(np.round(win_length * factor))
    hop_length_new = int(np.round(hop_length * speed))

    size = n_fft // 2 + 1            # freq bins kept (module crops/pads to this)
    n_freq_new = n_fft_new // 2 + 1

    # --- constants: Hann window folded into one-sided DFT, lane-padded -------
    win = hann_window_periodic(win_length_new)
    lpad = (n_fft_new - win_length_new) // 2
    win_full = np.zeros((n_fft_new,), dtype=np.float64)
    win_full[lpad:lpad + win_length_new] = win
    cos_m, sin_m = dft_matrices(n_fft_new)                    # (n_fft_new, n_freq_new)
    scale = 1.0 if keyshift == 0 else float(win_length) / float(win_length_new)
    wcos = win_full[:, None] * cos_m * scale
    wsin = win_full[:, None] * sin_m * scale

    n_freq_pad = _round_up(size, 128)

    def _fit_freq(m):
        out = np.zeros((n_fft_new, n_freq_pad), dtype=np.float64)
        k = min(size, n_freq_new)
        out[:, :k] = m[:, :k]
        return out

    wdft = np.concatenate([_fit_freq(wcos), _fit_freq(wsin)], axis=1)

    mel_basis = mel_filterbank(sampling_rate, n_fft, n_mel_channels, mel_fmin, mel_fmax)
    n_mel_pad = _round_up(n_mel_channels, 128)
    melT = np.zeros((n_freq_pad, n_mel_pad), dtype=np.float64)
    melT[:size, :n_mel_channels] = mel_basis.T

    wdft_j = jnp.asarray(wdft, dtype=matmul_dtype)
    melT_j = jnp.asarray(melT, dtype=matmul_dtype)

    # --- STFT framing (center=True, reflect padding) --------------------------
    x = audio.reshape(BC, T).astype(jnp.float32)
    pad = n_fft_new // 2
    x_pad = jnp.pad(x, ((0, 0), (pad, pad)), mode="reflect")
    t_pad = T + 2 * pad
    n_frames = 1 + (t_pad - n_fft_new) // hop_length_new
    assert n_frames >= 1
    assert (n_frames - 1) * hop_length_new + n_fft_new <= t_pad

    if n_fft_new % hop_length_new == 0:
        # Fast path: non-overlapping hop rows; kernel rebuilds frames in VMEM.
        chunk_len = hop_length_new
        ratio = n_fft_new // hop_length_new
    else:
        # TODO(synk): gcd-chunking or a manual-DMA frame window would avoid the
        # wrapper-side frame gather; only hit for keyshifted hop/n_fft combos.
        chunk_len = n_fft_new
        ratio = 1

    # --- frame tiling: bound the per-step VMEM working set -------------------
    itemsize = jnp.dtype(matmul_dtype).itemsize
    const_bufs = 1 if single_buffer_constants else 2
    vmem_cap = _vmem_capacity_bytes()
    budget = int(0.70 * vmem_cap)

    tf = max(8, (min(int(frame_tile), _round_up(n_frames, 8)) // 8) * 8)
    while tf > 8 and _vmem_bytes_per_step(tf, ratio, chunk_len, n_fft_new,
                                          n_freq_pad, n_mel_pad, itemsize,
                                          const_bufs) > budget:
        tf = max(8, ((tf // 2) // 8) * 8)

    n_frames_pad = _round_up(n_frames, tf)
    n_tiles = n_frames_pad // tf
    rows = tf + ratio - 1

    # --- per-tile halo'd hop-row slab (no overlapping frames in HBM) ---------
    if ratio > 1:
        total_rows = n_frames_pad + ratio - 1
        need = total_rows * chunk_len
        if need > t_pad:
            x_pad = jnp.pad(x_pad, ((0, 0), (0, need - t_pad)))
        chunks_all = x_pad[:, :need].reshape(BC, total_rows, chunk_len)
        if n_tiles == 1:
            slab = chunks_all[:, None, :rows, :]
        else:
            row_idx = np.arange(n_tiles)[:, None] * tf + np.arange(rows)[None, :]
            slab = chunks_all[:, row_idx.reshape(-1), :].reshape(
                BC, n_tiles, rows, chunk_len)
    else:
        need = (n_frames_pad - 1) * hop_length_new + n_fft_new
        if need > t_pad:
            x_pad = jnp.pad(x_pad, ((0, 0), (0, need - t_pad)))
        idx = (np.arange(n_frames_pad) * hop_length_new)[:, None] \
            + np.arange(n_fft_new)[None, :]
        slab = x_pad[:, idx.reshape(-1)].reshape(BC, n_tiles, tf, n_fft_new)

    assert slab.shape == (BC, n_tiles, rows, chunk_len), slab.shape

    kernel = functools.partial(
        _audio2mel_kernel, frame_tile=tf, ratio=ratio, n_freq_pad=n_freq_pad,
        clamp=float(clamp), matmul_dtype=matmul_dtype)

    # Generation-aware VMEM limit (only request above the 32 MiB default).
    est = _vmem_bytes_per_step(tf, ratio, chunk_len, n_fft_new, n_freq_pad,
                               n_mel_pad, itemsize, const_bufs)
    req = int(est * 1.3)
    vmem_limit = None if req <= 32 * 1024 * 1024 else min(req, int(0.9 * vmem_cap))

    flops = (2 * BC * n_frames_pad * n_fft_new * (2 * n_freq_pad)
             + 2 * BC * n_frames_pad * n_freq_pad * n_mel_pad)
    transcendentals = BC * n_frames_pad * (n_freq_pad + n_mel_pad)  # sqrt + log10
    bytes_accessed = int(slab.size * 4 + wdft_j.size * itemsize
                         + melT_j.size * itemsize
                         + BC * n_frames_pad * n_mel_pad * 4)
    cost = pl.CostEstimate(flops=int(flops), transcendentals=int(transcendentals),
                           bytes_accessed=bytes_accessed)

    def _run(single_buf):
        const_kw = (dict(pipeline_mode=pl.Buffered(buffer_count=1))
                    if single_buf else {})
        grid_spec = pltpu.PrefetchScalarGridSpec(
            num_scalar_prefetch=0,
            grid=(BC, n_tiles),
            in_specs=[
                pl.BlockSpec((1, 1, rows, chunk_len), lambda b, t: (b, t, 0, 0)),
                pl.BlockSpec((n_fft_new, 2 * n_freq_pad), lambda b, t: (0, 0),
                             **const_kw),
                pl.BlockSpec((n_freq_pad, n_mel_pad), lambda b, t: (0, 0),
                             **const_kw),
            ],
            out_specs=pl.BlockSpec((1, tf, n_mel_pad), lambda b, t: (b, t, 0)),
        )
        return pl.pallas_call(
            kernel,
            out_shape=jax.ShapeDtypeStruct((BC, n_frames_pad, n_mel_pad),
                                           jnp.float32),
            grid_spec=grid_spec,
            compiler_params=pltpu.CompilerParams(
                dimension_semantics=("parallel", "parallel"),
                vmem_limit_bytes=vmem_limit,
            ),
            cost_estimate=cost,
        )(slab, wdft_j, melT_j)

    if single_buffer_constants:
        try:
            out = _run(True)
        except Exception:
            # pl.Buffered(buffer_count=1) not supported -> default double buffer.
            out = _run(False)
    else:
        out = _run(False)

    # drop frame / mel padding, then (BC, F, n_mel) -> (B, F, C, n_mel)
    out = out[:, :n_frames, :n_mel_channels]
    out = out.reshape(B, C, n_frames, n_mel_channels).transpose(0, 2, 1, 3)
    if C == 1:
        out = out.squeeze(2)
    return out


# ----------------------------------------------------------------------------
# Pure-JAX reference (keyshift=0 path).  Mirrors the kernel's cast points so it
# can be used to validate both the f32 and bf16 matmul_dtype configurations.
# ----------------------------------------------------------------------------
def audio2mel_ref(audio, *, hop_length, sampling_rate, n_mel_channels, win_length,
                  n_fft=None, mel_fmin=0.0, mel_fmax=None, clamp=1e-5,
                  matmul_dtype=jnp.float32):
    n_fft = win_length if n_fft is None else n_fft
    B, C, T = audio.shape
    win = hann_window_periodic(win_length)
    lpad = (n_fft - win_length) // 2
    win_full = np.zeros((n_fft,), dtype=np.float64)
    win_full[lpad:lpad + win_length] = win
    cos_m, sin_m = dft_matrices(n_fft)
    wcos = jnp.asarray(win_full[:, None] * cos_m, dtype=matmul_dtype)
    wsin = jnp.asarray(win_full[:, None] * sin_m, dtype=matmul_dtype)
    melT = jnp.asarray(
        mel_filterbank(sampling_rate, n_fft, n_mel_channels, mel_fmin, mel_fmax).T,
        dtype=matmul_dtype)

    x = audio.reshape(B * C, T).astype(jnp.float32)
    pad = n_fft // 2
    x_pad = jnp.pad(x, ((0, 0), (pad, pad)), mode="reflect")
    n_frames = 1 + (T + 2 * pad - n_fft) // hop_length
    idx = (np.arange(n_frames) * hop_length)[:, None] + np.arange(n_fft)[None, :]
    frames = x_pad[:, idx].astype(matmul_dtype)       # un-windowed; window is in wcos
    real = jnp.einsum("bfn,nk->bfk", frames, wcos,
                      preferred_element_type=jnp.float32)
    imag = jnp.einsum("bfn,nk->bfk", frames, wsin,
                      preferred_element_type=jnp.float32)
    mag = jnp.sqrt(real * real + imag * imag)
    mel = jnp.einsum("bfk,km->bfm", mag.astype(matmul_dtype), melT,
                     preferred_element_type=jnp.float32)
    out = jnp.log10(jnp.maximum(mel, clamp))
    out = out.reshape(B, C, n_frames, n_mel_channels).transpose(0, 2, 1, 3)
    if C == 1:
        out = out.squeeze(2)
    return out


if __name__ == "__main__":
    hop_length = 32
    win_length = 128          # n_fft = win_length
    sampling_rate = 16000
    n_mel_channels = 16
    common = dict(hop_length=hop_length, sampling_rate=sampling_rate,
                  n_mel_channels=n_mel_channels, win_length=win_length)

    # Case 1: B=2, C=1 (squeezed channel), default bfloat16 MXU path.
    B, C, T = 2, 1, 256
    audio = jax.random.normal(jax.random.PRNGKey(0), (B, C, T), dtype=jnp.float32)
    out = jax.block_until_ready(audio2mel(audio, **common))
    ref = jax.block_until_ready(
        audio2mel_ref(audio, matmul_dtype=jnp.bfloat16, **common))
    assert out.shape == (B, 1 + T // hop_length, n_mel_channels), out.shape
    np.testing.assert_allclose(np.asarray(out), np.asarray(ref), rtol=5e-3, atol=5e-3)

    # Case 2: B=1, C=2 (multi-channel, no squeeze), float32 MXU path, tight check.
    B2, C2, T2 = 1, 2, 160
    audio2 = jax.random.normal(jax.random.PRNGKey(1), (B2, C2, T2), dtype=jnp.float32)
    out2 = jax.block_until_ready(
        audio2mel(audio2, matmul_dtype=jnp.float32, **common))
    ref2 = jax.block_until_ready(
        audio2mel_ref(audio2, matmul_dtype=jnp.float32, **common))
    assert out2.shape == (B2, 1 + T2 // hop_length, C2, n_mel_channels), out2.shape
    np.testing.assert_allclose(np.asarray(out2), np.asarray(ref2),
                               rtol=1e-3, atol=1e-3)

    # Case 3: longer audio with a forced small frame tile -> multiple frame
    # tiles + halo windows exercised (grid = (1, 5)).
    B3, C3, T3 = 1, 1, 2048
    audio3 = jax.random.normal(jax.random.PRNGKey(2), (B3, C3, T3), dtype=jnp.float32)
    out3 = jax.block_until_ready(
        audio2mel(audio3, matmul_dtype=jnp.float32, frame_tile=16, **common))
    ref3 = jax.block_until_ready(
        audio2mel_ref(audio3, matmul_dtype=jnp.float32, **common))
    assert out3.shape == (B3, 1 + T3 // hop_length, n_mel_channels), out3.shape
    np.testing.assert_allclose(np.asarray(out3), np.asarray(ref3),
                               rtol=1e-3, atol=1e-3)

    print("KERNEL_OK")
</pallas_src>

<mosaic_0001>
module attributes {stable_mosaic.version = 11 : i64} {
  func.func @_audio2mel_kernel(%arg0: i32, %arg1: i32, %arg2: memref<1x1x19x32xf32, #tpu.memory_space<vmem>>, %arg3: memref<128x256xbf16, #tpu.memory_space<vmem>>, %arg4: memref<128x128xbf16, #tpu.memory_space<vmem>>, %arg5: memref<1x16x128xf32, #tpu.memory_space<vmem>>) attributes {dimension_semantics = [#tpu.dimension_semantics<parallel>, #tpu.dimension_semantics<parallel>], iteration_bounds = array<i64: 2, 1>, scalar_prefetch = 0 : i64, scratch_operands = 0 : i64, tpu.core_type = #tpu.core_type<tc>, window_params = [{transform_indices = @transform_0, window_bounds = array<i64: 1, 1, 19, 32>}, {pipeline_mode = #tpu.pipeline_mode<synchronous>, transform_indices = @transform_1, window_bounds = array<i64: 128, 256>}, {pipeline_mode = #tpu.pipeline_mode<synchronous>, transform_indices = @transform_2, window_bounds = array<i64: 128, 128>}, {transform_indices = @transform_3, window_bounds = array<i64: 1, 16, 128>}]} {
    %c0 = arith.constant 0 : index
    %c0_0 = arith.constant 0 : index
    %c0_1 = arith.constant 0 : index
    %c0_2 = arith.constant 0 : index
    %0 = vector.load %arg2[%c0, %c0_0, %c0_1, %c0_2] : memref<1x1x19x32xf32, #tpu.memory_space<vmem>>, vector<1x1x16x32xf32>
    %1 = vector.shape_cast %0 : vector<1x1x16x32xf32> to vector<16x32xf32>
    %c0_3 = arith.constant 0 : index
    %c0_4 = arith.constant 0 : index
    %c1 = arith.constant 1 : index
    %c0_5 = arith.constant 0 : index
    %2 = vector.load %arg2[%c0_3, %c0_4, %c1, %c0_5] : memref<1x1x19x32xf32, #tpu.memory_space<vmem>>, vector<1x1x16x32xf32>
    %3 = vector.shape_cast %2 : vector<1x1x16x32xf32> to vector<16x32xf32>
    %c0_6 = arith.constant 0 : index
    %c0_7 = arith.constant 0 : index
    %c2 = arith.constant 2 : index
    %c0_8 = arith.constant 0 : index
    %4 = vector.load %arg2[%c0_6, %c0_7, %c2, %c0_8] : memref<1x1x19x32xf32, #tpu.memory_space<vmem>>, vector<1x1x16x32xf32>
    %5 = vector.shape_cast %4 : vector<1x1x16x32xf32> to vector<16x32xf32>
    %c0_9 = arith.constant 0 : index
    %c0_10 = arith.constant 0 : index
    %c3 = arith.constant 3 : index
    %c0_11 = arith.constant 0 : index
    %6 = vector.load %arg2[%c0_9, %c0_10, %c3, %c0_11] : memref<1x1x19x32xf32, #tpu.memory_space<vmem>>, vector<1x1x16x32xf32>
    %7 = vector.shape_cast %6 : vector<1x1x16x32xf32> to vector<16x32xf32>
    %8 = tpu.concatenate %1, %3, %5, %7 in 1 : vector<16x32xf32>, vector<16x32xf32>, vector<16x32xf32>, vector<16x32xf32> -> vector<16x128xf32>
    %9 = arith.truncf %8 : vector<16x128xf32> to vector<16x128xbf16>
    %c0_12 = arith.constant 0 : index
    %c0_13 = arith.constant 0 : index
    %10 = vector.load %arg3[%c0_12, %c0_13] : memref<128x256xbf16, #tpu.memory_space<vmem>>, vector<128x256xbf16>
    %cst = arith.constant dense<0.000000e+00> : vector<16x256xf32>
    %11 = tpu.matmul %9, %10, %cst {dimension_numbers = #tpu.dot_dimension_numbers<[1], [0], [0], [1], [0, 0, 1, 1], [], []>} : vector<16x128xbf16>, vector<128x256xbf16>, vector<16x256xf32> -> vector<16x256xf32>
    %12 = vector.extract_strided_slice %11 {offsets = [0, 0], sizes = [16, 128], strides = [1, 1]} : vector<16x256xf32> to vector<16x128xf32>
    %13 = vector.extract_strided_slice %11 {offsets = [0, 128], sizes = [16, 128], strides = [1, 1]} : vector<16x256xf32> to vector<16x128xf32>
    %14 = arith.mulf %12, %12 : vector<16x128xf32>
    %15 = arith.mulf %13, %13 : vector<16x128xf32>
    %16 = arith.addf %14, %15 : vector<16x128xf32>
    %17 = math.sqrt %16 : vector<16x128xf32>
    %18 = arith.truncf %17 : vector<16x128xf32> to vector<16x128xbf16>
    %c0_14 = arith.constant 0 : index
    %c0_15 = arith.constant 0 : index
    %19 = vector.load %arg4[%c0_14, %c0_15] : memref<128x128xbf16, #tpu.memory_space<vmem>>, vector<128x128xbf16>
    %cst_16 = arith.constant dense<0.000000e+00> : vector<16x128xf32>
    %20 = tpu.matmul %18, %19, %cst_16 {dimension_numbers = #tpu.dot_dimension_numbers<[1], [0], [0], [1], [0, 0, 1, 1], [], []>} : vector<16x128xbf16>, vector<128x128xbf16>, vector<16x128xf32> -> vector<16x128xf32>
    %cst_17 = arith.constant 9.99999974E-6 : f32
    %21 = vector.broadcast %cst_17 : f32 to vector<16x128xf32>
    %22 = arith.maximumf %20, %21 : vector<16x128xf32>
    %23 = math.log %22 : vector<16x128xf32>
    %cst_18 = arith.constant 0.434294492 : f32
    %24 = vector.broadcast %cst_18 : f32 to vector<16x128xf32>
    %25 = arith.mulf %23, %24 : vector<16x128xf32>
    %c0_19 = arith.constant 0 : index
    %c0_20 = arith.constant 0 : index
    %c0_21 = arith.constant 0 : index
    %26 = vector.load %arg5[%c0_19, %c0_20, %c0_21] : memref<1x16x128xf32, #tpu.memory_space<vmem>>, vector<1x16x128xf32>
    %27 = vector.shape_cast %26 : vector<1x16x128xf32> to vector<16x128xf32>
    %28 = vector.shape_cast %25 : vector<16x128xf32> to vector<1x16x128xf32>
    tpu.vector_store %arg5[%c0_19, %c0_20, %c0_21], %28 {strides = array<i32>} : memref<1x16x128xf32, #tpu.memory_space<vmem>>, vector<1x16x128xf32>,
    return
  }
  func.func @transform_0(%arg0: i32, %arg1: i32) -> (i32, i32, i32, i32) {
    %c0_i32 = arith.constant 0 : i32
    %c0_i32_0 = arith.constant 0 : i32
    %c0_i32_1 = arith.constant 0 : i32
    return %arg0, %arg1, %c0_i32, %c0_i32_0 : i32, i32, i32, i32
  }
  func.func @transform_1(%arg0: i32, %arg1: i32) -> (i32, i32) {
    %c0_i32 = arith.constant 0 : i32
    %c0_i32_0 = arith.constant 0 : i32
    %c0_i32_1 = arith.constant 0 : i32
    return %c0_i32, %c0_i32_0 : i32, i32
  }
  func.func @transform_2(%arg0: i32, %arg1: i32) -> (i32, i32) {
    %c0_i32 = arith.constant 0 : i32
    %c0_i32_0 = arith.constant 0 : i32
    %c0_i32_1 = arith.constant 0 : i32
    return %c0_i32, %c0_i32_0 : i32, i32
  }
  func.func @transform_3(%arg0: i32, %arg1: i32) -> (i32, i32, i32) {
    %c0_i32 = arith.constant 0 : i32
    %c0_i32_0 = arith.constant 0 : i32
    return %arg0, %arg1, %c0_i32 : i32, i32, i32
  }
}

module attributes {stable_mosaic.version = 11 : i64} {
  func.func @_audio2mel_kernel(%arg0: i32, %arg1: i32, %arg2: memref<1x1x19x32xf32, #tpu.memory_space<vmem>>, %arg3: memref<128x256xbf16, #tpu.memory_space<vmem>>, %arg4: memref<128x128xbf16, #tpu.memory_space<vmem>>, %arg5: memref<1x16x128xf32, #tpu.memory_space<vmem>>) attributes {dimension_semantics = [#tpu.dimension_semantics<parallel>, #tpu.dimension_semantics<parallel>], iteration_bounds = array<i64: 2, 1>, scalar_prefetch = 0 : i64, scratch_operands = 0 : i64, tpu.core_type = #tpu.core_type<tc>, window_params = [{transform_indices = @transform_0, window_bounds = array<i64: 1, 1, 19, 32>}, {pipeline_mode = #tpu.pipeline_mode<synchronous>, transform_indices = @transform_1, window_bounds = array<i64: 128, 256>}, {pipeline_mode = #tpu.pipeline_mode<synchronous>, transform_indices = @transform_2, window_bounds = array<i64: 128, 128>}, {transform_indices = @transform_3, window_bounds = array<i64: 1, 16, 128>}]} {
    %c0 = arith.constant 0 : index
    %c0_0 = arith.constant 0 : index
    %c0_1 = arith.constant 0 : index
    %c0_2 = arith.constant 0 : index
    %0 = vector.load %arg2[%c0, %c0_0, %c0_1, %c0_2] : memref<1x1x19x32xf32, #tpu.memory_space<vmem>>, vector<1x1x16x32xf32>
    %1 = vector.shape_cast %0 : vector<1x1x16x32xf32> to vector<16x32xf32>
    %c0_3 = arith.constant 0 : index
    %c0_4 = arith.constant 0 : index
    %c1 = arith.constant 1 : index
    %c0_5 = arith.constant 0 : index
    %2 = vector.load %arg2[%c0_3, %c0_4, %c1, %c0_5] : memref<1x1x19x32xf32, #tpu.memory_space<vmem>>, vector<1x1x16x32xf32>
    %3 = vector.shape_cast %2 : vector<1x1x16x32xf32> to vector<16x32xf32>
    %c0_6 = arith.constant 0 : index
    %c0_7 = arith.constant 0 : index
    %c2 = arith.constant 2 : index
    %c0_8 = arith.constant 0 : index
    %4 = vector.load %arg2[%c0_6, %c0_7, %c2, %c0_8] : memref<1x1x19x32xf32, #tpu.memory_space<vmem>>, vector<1x1x16x32xf32>
    %5 = vector.shape_cast %4 : vector<1x1x16x32xf32> to vector<16x32xf32>
    %c0_9 = arith.constant 0 : index
    %c0_10 = arith.constant 0 : index
    %c3 = arith.constant 3 : index
    %c0_11 = arith.constant 0 : index
    %6 = vector.load %arg2[%c0_9, %c0_10, %c3, %c0_11] : memref<1x1x19x32xf32, #tpu.memory_space<vmem>>, vector<1x1x16x32xf32>
    %7 = vector.shape_cast %6 : vector<1x1x16x32xf32> to vector<16x32xf32>
    %8 = tpu.concatenate %1, %3, %5, %7 in 1 : vector<16x32xf32>, vector<16x32xf32>, vector<16x32xf32>, vector<16x32xf32> -> vector<16x128xf32>
    %9 = arith.truncf %8 : vector<16x128xf32> to vector<16x128xbf16>
    %c0_12 = arith.constant 0 : index
    %c0_13 = arith.constant 0 : index
    %10 = vector.load %arg3[%c0_12, %c0_13] : memref<128x256xbf16, #tpu.memory_space<vmem>>, vector<128x256xbf16>
    %cst = arith.constant dense<0.000000e+00> : vector<16x256xf32>
    %11 = tpu.matmul %9, %10, %cst {dimension_numbers = #tpu.dot_dimension_numbers<[1], [0], [0], [1], [0, 0, 1, 1], [], []>} : vector<16x128xbf16>, vector<128x256xbf16>, vector<16x256xf32> -> vector<16x256xf32>
    %12 = vector.extract_strided_slice %11 {offsets = [0, 0], sizes = [16, 128], strides = [1, 1]} : vector<16x256xf32> to vector<16x128xf32>
    %13 = vector.extract_strided_slice %11 {offsets = [0, 128], sizes = [16, 128], strides = [1, 1]} : vector<16x256xf32> to vector<16x128xf32>
    %14 = arith.mulf %12, %12 : vector<16x128xf32>
    %15 = arith.mulf %13, %13 : vector<16x128xf32>
    %16 = arith.addf %14, %15 : vector<16x128xf32>
    %17 = math.sqrt %16 : vector<16x128xf32>
    %18 = arith.truncf %17 : vector<16x128xf32> to vector<16x128xbf16>
    %c0_14 = arith.constant 0 : index
    %c0_15 = arith.constant 0 : index
    %19 = vector.load %arg4[%c0_14, %c0_15] : memref<128x128xbf16, #tpu.memory_space<vmem>>, vector<128x128xbf16>
    %cst_16 = arith.constant dense<0.000000e+00> : vector<16x128xf32>
    %20 = tpu.matmul %18, %19, %cst_16 {dimension_numbers = #tpu.dot_dimension_numbers<[1], [0], [0], [1], [0, 0, 1, 1], [], []>} : vector<16x128xbf16>, vector<128x128xbf16>, vector<16x128xf32> -> vector<16x128xf32>
    %cst_17 = arith.constant 9.99999974E-6 : f32
    %21 = vector.broadcast %cst_17 : f32 to vector<16x128xf32>
    %22 = arith.maximumf %20, %21 : vector<16x128xf32>
    %23 = math.log %22 : vector<16x128xf32>
    %cst_18 = arith.constant 0.434294492 : f32
    %24 = vector.broadcast %cst_18 : f32 to vector<16x128xf32>
    %25 = arith.mulf %23, %24 : vector<16x128xf32>
    %c0_19 = arith.constant 0 : index
    %c0_20 = arith.constant 0 : index
    %c0_21 = arith.constant 0 : index
    %26 = vector.load %arg5[%c0_19, %c0_20, %c0_21] : memref<1x16x128xf32, #tpu.memory_space<vmem>>, vector<1x16x128xf32>
    %27 = vector.shape_cast %26 : vector<1x16x128xf32> to vector<16x128xf32>
    %28 = vector.shape_cast %25 : vector<16x128xf32> to vector<1x16x128xf32>
    tpu.vector_store %arg5[%c0_19, %c0_20, %c0_21], %28 {strides = array<i32>} : memref<1x16x128xf32, #tpu.memory_space<vmem>>, vector<1x16x128xf32>,
    return
  }
  func.func @transform_0(%arg0: i32, %arg1: i32) -> (i32, i32, i32, i32) {
    %c0_i32 = arith.constant 0 : i32
    %c0_i32_0 = arith.constant 0 : i32
    %c0_i32_1 = arith.constant 0 : i32
    return %arg0, %arg1, %c0_i32, %c0_i32_0 : i32, i32, i32, i32
  }
  func.func @transform_1(%arg0: i32, %arg1: i32) -> (i32, i32) {
    %c0_i32 = arith.constant 0 : i32
    %c0_i32_0 = arith.constant 0 : i32
    %c0_i32_1 = arith.constant 0 : i32
    return %c0_i32, %c0_i32_0 : i32, i32
  }
  func.func @transform_2(%arg0: i32, %arg1: i32) -> (i32, i32) {
    %c0_i32 = arith.constant 0 : i32
    %c0_i32_0 = arith.constant 0 : i32
    %c0_i32_1 = arith.constant 0 : i32
    return %c0_i32, %c0_i32_0 : i32, i32
  }
  func.func @transform_3(%arg0: i32, %arg1: i32) -> (i32, i32, i32) {
    %c0_i32 = arith.constant 0 : i32
    %c0_i32_0 = arith.constant 0 : i32
    return %arg0, %arg1, %c0_i32 : i32, i32, i32
  }
}

</mosaic_0001>

<llo_original>
// kernel: tpu_custom_call.1
$region0: #{tpu_custom_call.1}
  #allocation0 [shape = 'u32[]', space=smem, size = 0x4, offset = 0x4, fixed_abs, tag = 'smem constant byte address 0x4 - core index']
  #allocation1 [shape = 'u32[144,128]{1,0:T(1,128)}', space=vmem, size = 0x12000, scoped, tag = 'internal scratch']
  %s0 = inlined_call_operand.vmem [shape: f32[2,1,19,32], index: 0, kind: input, shape index: {}]
  %s1 = inlined_call_operand.hbm [shape: bf16[128,256], index: 1, kind: input, shape index: {}]
  %s2 = inlined_call_operand.vmem [shape: bf16[128,128], index: 2, kind: input, shape index: {}]
  %s3 = inlined_call_operand.hbm [shape: f32[2,16,128], index: 3, kind: output, shape index: {}]
  %s4 = sld [smem:[#allocation0]]
  $region49: #{tpu_custom_call.1} parent=0
    _
  %s6 = ssub.s32 1, %s4
  %s7 = scalar_select 0, %s6, %s4
  $region1: #{tpu_custom_call.1} parent=0
    #allocation2 [shape = 'u8[65536]{0}', space=vmem, size = 0x10000, scoped, tag = 'input window, operand 1, single buffered']
    #allocation3 [shape = 's32[2]{0}', space=sflag, size = 0x8, scoped, tag = 'scoped memory for tpu_custom_call.1']
    #allocation4 [shape = 's32[2]{0}', space=sflag, size = 0x8, scoped, tag = 'scoped memory for tpu_custom_call.1']
    #allocation5 [shape = 'u8[16384]{0}', space=vmem, size = 0x4000, scoped, tag = 'output window, operand 0']
    %8 = vsyncpa [#allocation3], 0
    %9 = vsyncpa [#allocation4], 0
    %s10 = scalar_lea.sflag [#allocation4], 1
    %11 = vsyncpa %s10, 0
    loop: start=0, step=1, limit=4
    $region2: #{tpu_custom_call.1} parent=1 // loop_pre_header
      _
    $region3: #{tpu_custom_call.1} parent=1 // loop_header
      %s13 = sphi 0, %s17
      %p14 = scmp.ge.s32.totalorder %s13, 4
      %s20 = sphi 0, %s32
      %s21 = sphi 0, %s28
      %s22 = sphi 0, %s20
      %s23 = sphi 0, %s21
      %s24 = sphi 0, %s22
      %s25 = sphi 0, %s23
      %s37 = sphi 0, %s39
      %s40 = sphi 0, %s37
      %s41 = sphi 0, %s40
      %s57 = sphi 0, %s41
      %s61 = sphi 0, %s61
      %s63 = sphi 0, %s61
      %s64 = sphi 0, %s63
      %s78 = sphi 0, %s64
      %s82 = sphi 0, %s82
      %s84 = sphi 0, %s82
      %s85 = sphi 0, %s84
      %s99 = sphi 0, %s85
      %s107 = sphi 0, %s109
      %s110 = sphi 0, %s107
      %s111 = sphi 0, %s110
      %s127 = sphi 0, %s111
    $region4: #{tpu_custom_call.1} parent=1 // loop_header_branch
      %16 = sbr.rel (%p14) target = $region8
    $region5: #{tpu_custom_call.1} parent=1 // loop_body
      %s18 = ssub.s32 %s13, 1
      %s19 = ssub.s32 %s13, 2
      %s26 = sadd.s32 1, %s21
      %p27 = scmp.ge.s32.totalorder %s26, 1
      %s28 = scalar_select %p27, 0, %s26
      %s29 = sadd.s32 1, %s20
      %s30 = scalar_select %p27, %s29, %s20
      %p31 = scmp.ge.s32.totalorder %s30, 2
      %s32 = scalar_select %p31, 0, %s30
      %s33 = ssub.s32 %s20, %s32
      %s34 = ssub.s32 %s21, %s28
      %s35 = sor.u32 %s33, %s34
      %p36 = scmp.eq.s32.totalorder %s35, 0
      %s38 = sadd.s32 %s37, 1
      %s39 = scalar_select %p36, %s37, %s38
      %p42 = pneg %p36
      %p43 = scmp.eq.s32.totalorder %s13, 1
      %p44 = por %p42, %p43
      %p45 = scmp.ne.s32.totalorder %s37, %s40
      %p46 = scmp.eq.s32.totalorder %s13, 0
      %p47 = por %p45, %p46
      %p48 = scmp.ne.s32.totalorder %s37, %s40
      %p49 = scmp.eq.s32.totalorder %s18, 1
      %p50 = por %p48, %p49
      %p51 = scmp.ne.s32.totalorder %s40, %s41
      %p52 = scmp.eq.s32.totalorder %s18, 0
      %p53 = por %p51, %p52
      %p54 = scmp.ne.s32.totalorder %s40, %s41
      %p55 = scmp.eq.s32.totalorder %s19, 1
      %p56 = por %p54, %p55
      %p58 = scmp.ne.s32.totalorder %s41, %s57
      %p59 = scmp.eq.s32.totalorder %s19, 0
      %p60 = por %p58, %p59
      %s62 = sadd.s32 %s61, 1
      %p65 = scmp.eq.s32.totalorder %s13, 1
      %p66 = scmp.ne.s32.totalorder %s61, %s63
      %p67 = scmp.eq.s32.totalorder %s13, 0
      %p68 = por %p66, %p67
      %p69 = scmp.ne.s32.totalorder %s61, %s63
      %p70 = scmp.eq.s32.totalorder %s18, 1
      %p71 = por %p69, %p70
      %p72 = scmp.ne.s32.totalorder %s63, %s64
      %p73 = scmp.eq.s32.totalorder %s18, 0
      %p74 = por %p72, %p73
      %p75 = scmp.ne.s32.totalorder %s63, %s64
      %p76 = scmp.eq.s32.totalorder %s19, 1
      %p77 = por %p75, %p76
      %p79 = scmp.ne.s32.totalorder %s64, %s78
      %p80 = scmp.eq.s32.totalorder %s19, 0
      %p81 = por %p79, %p80
      %s83 = sadd.s32 %s82, 1
      %p86 = scmp.eq.s32.totalorder %s13, 1
      %p87 = scmp.ne.s32.totalorder %s82, %s84
      %p88 = scmp.eq.s32.totalorder %s13, 0
      %p89 = por %p87, %p88
      %p90 = scmp.ne.s32.totalorder %s82, %s84
      %p91 = scmp.eq.s32.totalorder %s18, 1
      %p92 = por %p90, %p91
      %p93 = scmp.ne.s32.totalorder %s84, %s85
      %p94 = scmp.eq.s32.totalorder %s18, 0
      %p95 = por %p93, %p94
      %p96 = scmp.ne.s32.totalorder %s84, %s85
      %p97 = scmp.eq.s32.totalorder %s19, 1
      %p98 = por %p96, %p97
      %p100 = scmp.ne.s32.totalorder %s85, %s99
      %p101 = scmp.eq.s32.totalorder %s19, 0
      %p102 = por %p100, %p101
      %s103 = ssub.s32 %s20, %s32
      %s104 = ssub.s32 %s21, %s28
      %s105 = sor.u32 %s103, %s104
      %p106 = scmp.eq.s32.totalorder %s105, 0
      %s108 = sadd.s32 %s107, 1
      %s109 = scalar_select %p106, %s107, %s108
      %p112 = pneg %p106
      %p113 = scmp.eq.s32.totalorder %s13, 1
      %p114 = por %p112, %p113
      %p115 = scmp.ne.s32.totalorder %s107, %s110
      %p116 = scmp.eq.s32.totalorder %s13, 0
      %p117 = por %p115, %p116
      %p118 = scmp.ne.s32.totalorder %s107, %s110
      %p119 = scmp.eq.s32.totalorder %s18, 1
      %p120 = por %p118, %p119
      %p121 = scmp.ne.s32.totalorder %s110, %s111
      %p122 = scmp.eq.s32.totalorder %s18, 0
      %p123 = por %p121, %p122
      %p124 = scmp.ne.s32.totalorder %s110, %s111
      %p125 = scmp.eq.s32.totalorder %s19, 1
      %p126 = por %p124, %p125
      %p128 = scmp.ne.s32.totalorder %s111, %s127
      %p129 = scmp.eq.s32.totalorder %s19, 0
      %p130 = por %p128, %p129
      %p131 = scmp.le.s32.totalorder 1, %s13
      %p132 = scmp.lt.s32.totalorder %s13, 3
      %p133 = pnand %p131, %p132
      %p134 = pneg %p133
      // Predicated region
      $region9: #{tpu_custom_call.1} parent=5 // pred_check
        _
      $region10: #{tpu_custom_call.1} parent=5 // pred_check_branch
        %136 = sbr.rel (%p133) target = $region12
      $region11: #{tpu_custom_call.1} parent=5 // pred_region
        %s137 = ssub.s32 %s13, 1
        // Predicated region
        $region13: #{tpu_custom_call.1} parent=11 // pred_check
          %p138 = pneg %p74
        $region14: #{tpu_custom_call.1} parent=11 // pred_check_branch
          %140 = sbr.rel (%p138) target = $region16
        $region15: #{tpu_custom_call.1} parent=11 // pred_region
          %s142 = ssub.s32 2048, 2048
          %143 = vsyncadd [#allocation3], %s142
          %s144 = sshll.u32 [#allocation2], 4
          %s145 = int_to_ptr.vmem [resolvable:$true] %s144
          %150 = dma.hbm_to_vmem [thread:$0]  %s1, 2048, %s145, [#allocation3], 128, 128, 8
        $region16: #{tpu_custom_call.1} parent=11 // pred_fallthru
          _
        // Predicated region
        $region17: #{tpu_custom_call.1} parent=11 // pred_check
          %p151 = pneg %p95
        $region18: #{tpu_custom_call.1} parent=11 // pred_check_branch
          %153 = sbr.rel (%p151) target = $region20
        $region19: #{tpu_custom_call.1} parent=11 // pred_region
          _
        $region20: #{tpu_custom_call.1} parent=11 // pred_fallthru
          _
      $region12: #{tpu_custom_call.1} parent=5 // pred_fallthru
        _
      %p154 = scmp.lt.s32.totalorder %s13, 2
      // Predicated region
      $region21: #{tpu_custom_call.1} parent=5 // pred_check
        %p155 = pneg %p154
      $region22: #{tpu_custom_call.1} parent=5 // pred_check_branch
        %157 = sbr.rel (%p155) target = $region24
      $region23: #{tpu_custom_call.1} parent=5 // pred_region
        // Predicated region
        $region25: #{tpu_custom_call.1} parent=23 // pred_check
          %p158 = pneg %p47
        $region26: #{tpu_custom_call.1} parent=23 // pred_check_branch
          %160 = sbr.rel (%p158) target = $region28
        $region27: #{tpu_custom_call.1} parent=23 // pred_region
          %p161 = scmp.lt.s32.totalorder %s20, 1
          %s162 = scalar_select %p161, %s20, 1
          %p163 = scmp.lt.s32.totalorder %s21, 0
          %s164 = scalar_select %p163, %s21, 0
          %s165 = smul.addr %s164, 3
          %s166 = smul.addr %s162, 3
          %s167 = sadd.s32 %s165, %s166
          %s168 = smul.addr %s167, 8
          %s169 = scalar_lea.vmem %s0, %s168
        $region28: #{tpu_custom_call.1} parent=23 // pred_fallthru
          _
      $region24: #{tpu_custom_call.1} parent=5 // pred_fallthru
        _
      %p170 = scmp.le.s32.totalorder 1, %s13
      %p171 = scmp.lt.s32.totalorder %s13, 3
      %p172 = pnand %p170, %p171
      %p173 = pneg %p172
      // Predicated region
      $region29: #{tpu_custom_call.1} parent=5 // pred_check
        _
      $region30: #{tpu_custom_call.1} parent=5 // pred_check_branch
        %175 = sbr.rel (%p172) target = $region32
      $region31: #{tpu_custom_call.1} parent=5 // pred_region
        %s176 = ssub.s32 %s13, 1
        // Predicated region
        $region33: #{tpu_custom_call.1} parent=31 // pred_check
          %p177 = pneg %p74
        $region34: #{tpu_custom_call.1} parent=31 // pred_check_branch
          %179 = sbr.rel (%p177) target = $region36
        $region35: #{tpu_custom_call.1} parent=31 // pred_region
          %180 = dma.done [#allocation3], 2048
        $region36: #{tpu_custom_call.1} parent=31 // pred_fallthru
          _
        %p181 = scmp.lt.s32.totalorder %s22, 1
        %s182 = scalar_select %p181, %s22, 1
        %p183 = scmp.lt.s32.totalorder %s23, 0
        %s184 = scalar_select %p183, %s23, 0
        %s185 = smul.addr %s184, 3
        %s186 = smul.addr %s182, 3
        %s187 = sadd.s32 %s185, %s186
        %s188 = smul.addr %s187, 8
        %s189 = scalar_lea.vmem %s0, %s188
        %p190 = pneg %p53
        %p191 = pneg %p50
        %p192 = pneg %p74
        %p193 = pneg %p71
        %p194 = pneg %p95
        %p195 = pneg %p92
        %p196 = pneg %p123
        %p197 = pneg %p120
        %s198 = sand.u32 %s110, 1
        %s199 = scalar_lea.sflag [#allocation4], %s198
        %s200 = sand.u32 %s110, 1
        %s201 = smul.addr %s200, 16
        %s202 = scalar_lea.vmem [#allocation5], %s201
        %p203 = scmp.lt.s32.totalorder %s22, 1
        %s204 = scalar_select %p203, %s22, 1
        %p205 = scmp.lt.s32.totalorder %s23, 0
        %s206 = scalar_select %p205, %s23, 0
        %s207 = smul.addr %s206, 3
        %s208 = smul.addr %s204, 3
        %s209 = sadd.s32 %s207, %s208
        %s210 = smul.addr %s209, 8
        %s211 = scalar_lea.vmem %s0, %s210
        %s212 = smul.u32 2, %s23
        %v214 = vld [vmem:[%s211] sm:$0xff]
        %v215 = vld [vmem:[%s211 + $0x8] sm:$0xff]
        %v216 = vld [vmem:[%s211 + $0x1] sm:$0xff]
        %v217 = vld [vmem:[%s211 + $0x9] sm:$0xff]
        %v218 = vld [vmem:[%s211 + $0x2] sm:$0xff]
        %v219 = vld [vmem:[%s211 + $0xa] sm:$0xff]
        %v220 = vld [vmem:[%s211 + $0x3] sm:$0xff]
        %v221 = vld [vmem:[%s211 + $0xb] sm:$0xff]
        %224 = vrot.lane.b32.xlu0 %v216, 32
        %v225 = vpop.permute.xlu0 %224
        %226 = vrot.lane.b32.xlu0 %v217, 32
        %v227 = vpop.permute.xlu0 %226
        %232 = vrot.lane.b32.xlu0 %v218, 64
        %v233 = vpop.permute.xlu0 %232
        %234 = vrot.lane.b32.xlu0 %v219, 64
        %v235 = vpop.permute.xlu0 %234
        %240 = vrot.lane.b32.xlu0 %v220, 96
        %v241 = vpop.permute.xlu0 %240
        %242 = vrot.lane.b32.xlu0 %v221, 96
        %v243 = vpop.permute.xlu0 %242
        %vm246 = vcmask 261120
        %v247 = vsel %vm246, %v214, %v225
        %v248 = vsel %vm246, %v215, %v227
        %vm249 = vcmask 523264
        %v250 = vsel %vm249, %v247, %v233
        %v251 = vsel %vm249, %v248, %v235
        %vm252 = vcmask 785408
        %v253 = vsel %vm252, %v250, %v241
        %v254 = vsel %vm252, %v251, %v243
        %v255 = vpack.c.bf16 %v254, %v253
        %v256 = vld [vmem:[#allocation2] sm:$0xff]
        %v257 = vld [vmem:[#allocation2 + $0x8] sm:$0xff]
        %v258 = vld [vmem:[#allocation2 + $0x10] sm:$0xff]
        %v259 = vld [vmem:[#allocation2 + $0x18] sm:$0xff]
        %v260 = vld [vmem:[#allocation2 + $0x20] sm:$0xff]
        %v261 = vld [vmem:[#allocation2 + $0x28] sm:$0xff]
        %v262 = vld [vmem:[#allocation2 + $0x30] sm:$0xff]
        %v263 = vld [vmem:[#allocation2 + $0x38] sm:$0xff]
        %v264 = vld [vmem:[#allocation2 + $0x40] sm:$0xff]
        %v265 = vld [vmem:[#allocation2 + $0x48] sm:$0xff]
        %v266 = vld [vmem:[#allocation2 + $0x50] sm:$0xff]
        %v267 = vld [vmem:[#allocation2 + $0x58] sm:$0xff]
        %v268 = vld [vmem:[#allocation2 + $0x60] sm:$0xff]
        %v269 = vld [vmem:[#allocation2 + $0x68] sm:$0xff]
        %v270 = vld [vmem:[#allocation2 + $0x70] sm:$0xff]
        %v271 = vld [vmem:[#allocation2 + $0x78] sm:$0xff]
        %v288 = vunpack.c.l.b16 %v256
        %v289 = vunpack.c.h.b16 %v256
        %v290 = vunpack.c.l.b16 %v257
        %v291 = vunpack.c.h.b16 %v257
        %v292 = vunpack.c.l.b16 %v258
        %v293 = vunpack.c.h.b16 %v258
        %v294 = vunpack.c.l.b16 %v259
        %v295 = vunpack.c.h.b16 %v259
        %v296 = vunpack.c.l.b16 %v260
        %v297 = vunpack.c.h.b16 %v260
        %v298 = vunpack.c.l.b16 %v261
        %v299 = vunpack.c.h.b16 %v261
        %v300 = vunpack.c.l.b16 %v262
        %v301 = vunpack.c.h.b16 %v262
        %v302 = vunpack.c.l.b16 %v263
        %v303 = vunpack.c.h.b16 %v263
        %v304 = vunpack.c.l.b16 %v264
        %v305 = vunpack.c.h.b16 %v264
        %v306 = vunpack.c.l.b16 %v265
        %v307 = vunpack.c.h.b16 %v265
        %v308 = vunpack.c.l.b16 %v266
        %v309 = vunpack.c.h.b16 %v266
        %v310 = vunpack.c.l.b16 %v267
        %v311 = vunpack.c.h.b16 %v267
        %v312 = vunpack.c.l.b16 %v268
        %v313 = vunpack.c.h.b16 %v268
        %v314 = vunpack.c.l.b16 %v269
        %v315 = vunpack.c.h.b16 %v269
        %v316 = vunpack.c.l.b16 %v270
        %v317 = vunpack.c.h.b16 %v270
        %v318 = vunpack.c.l.b16 %v271
        %v319 = vunpack.c.h.b16 %v271
        %v320 = vpack.c.b16 %v290, %v288
        %v321 = vpack.c.b16 %v291, %v289
        %v322 = vpack.c.b16 %v294, %v292
        %v323 = vpack.c.b16 %v295, %v293
        %v324 = vpack.c.b16 %v298, %v296
        %v325 = vpack.c.b16 %v299, %v297
        %v326 = vpack.c.b16 %v302, %v300
        %v327 = vpack.c.b16 %v303, %v301
        %v328 = vpack.c.b16 %v306, %v304
        %v329 = vpack.c.b16 %v307, %v305
        %v330 = vpack.c.b16 %v310, %v308
        %v331 = vpack.c.b16 %v311, %v309
        %v332 = vpack.c.b16 %v314, %v312
        %v333 = vpack.c.b16 %v315, %v313
        %v334 = vpack.c.b16 %v318, %v316
        %v335 = vpack.c.b16 %v319, %v317
        %352 = vmatprep.subr.bf16.mxu0 %v335
        %353 = vmatpush1.bf16.msra.mxu0 %v334
        %354 = vmatprep.subr.bf16.mxu0 %v333
        %355 = vmatpush1.bf16.msra.mxu0 %v332
        %356 = vmatprep.subr.bf16.mxu0 %v331
        %357 = vmatpush1.bf16.msra.mxu0 %v330
        %358 = vmatprep.subr.bf16.mxu0 %v329
        %359 = vmatpush1.bf16.msra.mxu0 %v328
        %360 = vmatprep.subr.bf16.mxu0 %v327
        %361 = vmatpush1.bf16.msra.mxu0 %v326
        %362 = vmatprep.subr.bf16.mxu0 %v325
        %363 = vmatpush1.bf16.msra.mxu0 %v324
        %364 = vmatprep.subr.bf16.mxu0 %v323
        %365 = vmatpush1.bf16.msra.mxu0 %v322
        %366 = vmatprep.subr.bf16.mxu0 %v321
        %367 = vmatpush1.bf16.msra.mxu0 %v320
        %368 = vmatprep.subr.bf16.mxu0 0
        %369 = vmatpush2.bf16.msra.mxu0 0
        %370 = vmatprep.subr.bf16.mxu0 0
        %371 = vmatpush2.bf16.msra.mxu0 0
        %372 = vmatprep.subr.bf16.mxu0 0
        %373 = vmatpush2.bf16.msra.mxu0 0
        %374 = vmatprep.subr.bf16.mxu0 0
        %375 = vmatpush2.bf16.msra.mxu0 0
        %376 = vmatprep.subr.bf16.mxu0 0
        %377 = vmatpush2.bf16.msra.mxu0 0
        %378 = vmatprep.subr.bf16.mxu0 0
        %379 = vmatpush2.bf16.msra.mxu0 0
        %380 = vmatprep.subr.bf16.mxu0 0
        %381 = vmatpush2.bf16.msra.mxu0 0
        %382 = vmatprep.subr.bf16.mxu0 0
        %383 = vmatpush2.bf16.msra.mxu0 0
        %384 = vmatprep.mubr.bf16.mxu0 0
        %385 = vmatmul.mubr.bf16.gmra.mxu0 %v255
        %v386 = vpop.f32.mrf.mxu0
        %v387 = vadd.f32 0.0, %v386
        %v388 = vpop.f32.mrf.mxu0
        %v389 = vadd.f32 0.0, %v388
        %v390 = vpop.f32.mrf.mxu0
        %v391 = vadd.f32 0.0, %v390
        %v392 = vpop.f32.mrf.mxu0
        %v393 = vadd.f32 0.0, %v392
        %394 = vdwg.mxu0
        %v395 = vmul.f32 %v387, %v387
        %v396 = vmul.f32 %v391, %v391
        %v397 = vmul.f32 %v389, %v389
        %v398 = vmul.f32 %v393, %v393
        %v399 = vadd.f32 %v395, %v397
        %v400 = vadd.f32 %v396, %v398
        %v401 = vrsqrt.pop %v399
        %v402 = vmul.f32 %v399, %v401
        %vm403 = vcmp.eq.f32.partialorder %v399, inf
        %v404 = vsel %vm403, %v399, %v402
        %vm405 = vcmp.eq.f32.partialorder %v399, 0.0
        %v406 = vand.u32 %v399, 2147483648
        %v407 = vsel %vm405, %v406, %v404
        %v408 = vrsqrt.pop %v400
        %v409 = vmul.f32 %v400, %v408
        %vm410 = vcmp.eq.f32.partialorder %v400, inf
        %v411 = vsel %vm410, %v400, %v409
        %vm412 = vcmp.eq.f32.partialorder %v400, 0.0
        %v413 = vand.u32 %v400, 2147483648
        %v414 = vsel %vm412, %v413, %v411
        %v415 = vpack.c.bf16 %v414, %v407
        %v416 = vld [vmem:[%s2] sm:$0xf]
        %v417 = vld [vmem:[%s2 + $0x4] sm:$0xf]
        %v418 = vld [vmem:[%s2 + $0x8] sm:$0xf]
        %v419 = vld [vmem:[%s2 + $0xc] sm:$0xf]
        %v420 = vld [vmem:[%s2 + $0x10] sm:$0xf]
        %v421 = vld [vmem:[%s2 + $0x14] sm:$0xf]
        %v422 = vld [vmem:[%s2 + $0x18] sm:$0xf]
        %v423 = vld [vmem:[%s2 + $0x1c] sm:$0xf]
        %v424 = vld [vmem:[%s2 + $0x20] sm:$0xf]
        %v425 = vld [vmem:[%s2 + $0x24] sm:$0xf]
        %v426 = vld [vmem:[%s2 + $0x28] sm:$0xf]
        %v427 = vld [vmem:[%s2 + $0x2c] sm:$0xf]
        %v428 = vld [vmem:[%s2 + $0x30] sm:$0xf]
        %v429 = vld [vmem:[%s2 + $0x34] sm:$0xf]
        %v430 = vld [vmem:[%s2 + $0x38] sm:$0xf]
        %v431 = vld [vmem:[%s2 + $0x3c] sm:$0xf]
        %v448 = vunpack.c.l.b16 %v416
        %v449 = vunpack.c.l.b16 %v417
        %v450 = vunpack.c.l.b16 %v418
        %v451 = vunpack.c.l.b16 %v419
        %v452 = vunpack.c.l.b16 %v420
        %v453 = vunpack.c.l.b16 %v421
        %v454 = vunpack.c.l.b16 %v422
        %v455 = vunpack.c.l.b16 %v423
        %v456 = vunpack.c.l.b16 %v424
        %v457 = vunpack.c.l.b16 %v425
        %v458 = vunpack.c.l.b16 %v426
        %v459 = vunpack.c.l.b16 %v427
        %v460 = vunpack.c.l.b16 %v428
        %v461 = vunpack.c.l.b16 %v429
        %v462 = vunpack.c.l.b16 %v430
        %v463 = vunpack.c.l.b16 %v431
        %v464 = vpack.c.b16 %v449, %v448
        %v465 = vpack.c.b16 %v451, %v450
        %v466 = vpack.c.b16 %v453, %v452
        %v467 = vpack.c.b16 %v455, %v454
        %v468 = vpack.c.b16 %v457, %v456
        %v469 = vpack.c.b16 %v459, %v458
        %v470 = vpack.c.b16 %v461, %v460
        %v471 = vpack.c.b16 %v463, %v462
        %480 = vmatprep.subr.bf16.mxu0 0
        %481 = vmatpush1.bf16.msra.mxu0 %v471
        %482 = vmatprep.subr.bf16.mxu0 0
        %483 = vmatpush1.bf16.msra.mxu0 %v470
        %484 = vmatprep.subr.bf16.mxu0 0
        %485 = vmatpush1.bf16.msra.mxu0 %v469
        %486 = vmatprep.subr.bf16.mxu0 0
        %487 = vmatpush1.bf16.msra.mxu0 %v468
        %488 = vmatprep.subr.bf16.mxu0 0
        %489 = vmatpush1.bf16.msra.mxu0 %v467
        %490 = vmatprep.subr.bf16.mxu0 0
        %491 = vmatpush1.bf16.msra.mxu0 %v466
        %492 = vmatprep.subr.bf16.mxu0 0
        %493 = vmatpush1.bf16.msra.mxu0 %v465
        %494 = vmatprep.subr.bf16.mxu0 0
        %495 = vmatpush1.bf16.msra.mxu0 %v464
        %496 = vmatprep.subr.bf16.mxu0 0
        %497 = vmatpush2.bf16.msra.mxu0 0
        %498 = vmatprep.subr.bf16.mxu0 0
        %499 = vmatpush2.bf16.msra.mxu0 0
        %500 = vmatprep.subr.bf16.mxu0 0
        %501 = vmatpush2.bf16.msra.mxu0 0
        %502 = vmatprep.subr.bf16.mxu0 0
        %503 = vmatpush2.bf16.msra.mxu0 0
        %504 = vmatprep.subr.bf16.mxu0 0
        %505 = vmatpush2.bf16.msra.mxu0 0
        %506 = vmatprep.subr.bf16.mxu0 0
        %507 = vmatpush2.bf16.msra.mxu0 0
        %508 = vmatprep.subr.bf16.mxu0 0
        %509 = vmatpush2.bf16.msra.mxu0 0
        %510 = vmatprep.subr.bf16.mxu0 0
        %511 = vmatpush2.bf16.msra.mxu0 0
        %512 = vmatprep.mubr.bf16.mxu0 0
        %513 = vmatmul.mubr.bf16.gmra.mxu0 %v415
        %v514 = vpop.f32.mrf.mxu0
        %v515 = vadd.f32 0.0, %v514
        %v516 = vpop.f32.mrf.mxu0
        %v517 = vpop.f32.mrf.mxu0
        %v518 = vadd.f32 0.0, %v517
        %v519 = vpop.f32.mrf.mxu0
        %520 = vdwg.mxu0
        %v521 = vmax.f32 %v515, 1e-05
        %v522 = vmax.f32 %v518, 1e-05
        %v523 = vlog2.pop %v521
        %v524 = vmul.f32 %v523, 0.6931472
        %v525 = vlog2.pop %v522
        %v526 = vmul.f32 %v525, 0.6931472
        %v527 = vmul.f32 %v524, 0.4342945
        %v528 = vmul.f32 %v526, 0.4342945
        %529 = vst [vmem:[%s202] sm:$0xff] %v527
        %530 = vst [vmem:[%s202 + $0x8] sm:$0xff] %v528
        %s531 = sand.u32 %s110, 1
        %s532 = scalar_lea.sflag [#allocation4], %s531
        %s533 = sand.u32 %s110, 1
        %s534 = smul.addr %s533, 16
        %s535 = scalar_lea.vmem [#allocation5], %s534
        // Predicated region
        $region37: #{tpu_custom_call.1} parent=31 // pred_check
          %p536 = pneg %p120
        $region38: #{tpu_custom_call.1} parent=31 // pred_check_branch
          %538 = sbr.rel (%p536) target = $region40
        $region39: #{tpu_custom_call.1} parent=31 // pred_region
          %s539 = smul.u32 2, %s23
          %s541 = ssub.s32 256, 256
          %542 = vsyncadd %s532, %s541
          %s543 = smul.addr %s22, 2
          %s544 = sadd.s32 %s539, %s543
          %s545 = smul.addr %s544, 128
          %s546 = scalar_lea.hbm %s3, %s545
          %s547 = sshll.u32 %s535, 4
          %s548 = int_to_ptr.vmem [resolvable:$true] %s547
          %553 = dma.vmem_to_hbm [thread:$0]  %s548, 256, %s546, %s532, 128, 128, 8
        $region40: #{tpu_custom_call.1} parent=31 // pred_fallthru
          _
      $region32: #{tpu_custom_call.1} parent=5 // pred_fallthru
        _
      %p554 = scmp.le.s32.totalorder 2, %s13
      // Predicated region
      $region41: #{tpu_custom_call.1} parent=5 // pred_check
        %p555 = pneg %p554
      $region42: #{tpu_custom_call.1} parent=5 // pred_check_branch
        %557 = sbr.rel (%p555) target = $region44
      $region43: #{tpu_custom_call.1} parent=5 // pred_region
        %s558 = ssub.s32 %s13, 2
        // Predicated region
        $region45: #{tpu_custom_call.1} parent=43 // pred_check
          %p559 = pneg %p126
        $region46: #{tpu_custom_call.1} parent=43 // pred_check_branch
          %561 = sbr.rel (%p559) target = $region48
        $region47: #{tpu_custom_call.1} parent=43 // pred_region
          %s562 = sand.u32 %s111, 1
          %s563 = scalar_lea.sflag [#allocation4], %s562
          %s564 = sand.u32 %s111, 1
          %s565 = smul.addr %s564, 16
          %s566 = scalar_lea.vmem [#allocation5], %s565
          %567 = dma.done %s563, 256
        $region48: #{tpu_custom_call.1} parent=43 // pred_fallthru
          _
      $region44: #{tpu_custom_call.1} parent=5 // pred_fallthru
        _
    $region6: #{tpu_custom_call.1} parent=1 // loop_footer
      %s17 = sadd.s32 1, %s13
    $region7: #{tpu_custom_call.1} parent=1 // loop_footer_branch
      %12 = sbr.rel target = $region3
    $region8: #{tpu_custom_call.1} parent=1 // loop_exit
      _
    %568 = vsyncpa [#allocation3], 1
    %s569 = scalar_lea.sflag [#allocation3], 1
    %570 = vsyncpa %s569, 1
    %571 = vsyncpa [#allocation4], 1
    %s572 = scalar_lea.sflag [#allocation4], 1
    %573 = vsyncpa %s572, 1

// kernel: tpu_custom_call.1
$region0: #{tpu_custom_call.1}
  #allocation0 [shape = 'u32[]', space=smem, size = 0x4, offset = 0x4, fixed_abs, tag = 'smem constant byte address 0x4 - core index']
  #allocation1 [shape = 'u32[144,128]{1,0:T(1,128)}', space=vmem, size = 0x12000, scoped, tag = 'internal scratch']
  %s0 = inlined_call_operand.vmem [shape: f32[2,1,19,32], index: 0, kind: input, shape index: {}]
  %s1 = inlined_call_operand.hbm [shape: bf16[128,256], index: 1, kind: input, shape index: {}]
  %s2 = inlined_call_operand.vmem [shape: bf16[128,128], index: 2, kind: input, shape index: {}]
  %s3 = inlined_call_operand.hbm [shape: f32[2,16,128], index: 3, kind: output, shape index: {}]
  %s4 = sld [smem:[#allocation0]]
  $region49: #{tpu_custom_call.1} parent=0
    _
  %s6 = ssub.s32 1, %s4
  %s7 = scalar_select 0, %s6, %s4
  $region1: #{tpu_custom_call.1} parent=0
    #allocation2 [shape = 'u8[65536]{0}', space=vmem, size = 0x10000, scoped, tag = 'input window, operand 1, single buffered']
    #allocation3 [shape = 's32[2]{0}', space=sflag, size = 0x8, scoped, tag = 'scoped memory for tpu_custom_call.1']
    #allocation4 [shape = 's32[2]{0}', space=sflag, size = 0x8, scoped, tag = 'scoped memory for tpu_custom_call.1']
    #allocation5 [shape = 'u8[16384]{0}', space=vmem, size = 0x4000, scoped, tag = 'output window, operand 0']
    %8 = vsyncpa [#allocation3], 0
    %9 = vsyncpa [#allocation4], 0
    %s10 = scalar_lea.sflag [#allocation4], 1
    %11 = vsyncpa %s10, 0
    loop: start=0, step=1, limit=4
    $region2: #{tpu_custom_call.1} parent=1 // loop_pre_header
      _
    $region3: #{tpu_custom_call.1} parent=1 // loop_header
      %s13 = sphi 0, %s17
      %p14 = scmp.ge.s32.totalorder %s13, 4
      %s20 = sphi 0, %s32
      %s21 = sphi 0, %s28
      %s22 = sphi 0, %s20
      %s23 = sphi 0, %s21
      %s24 = sphi 0, %s22
      %s25 = sphi 0, %s23
      %s37 = sphi 0, %s39
      %s40 = sphi 0, %s37
      %s41 = sphi 0, %s40
      %s57 = sphi 0, %s41
      %s61 = sphi 0, %s61
      %s63 = sphi 0, %s61
      %s64 = sphi 0, %s63
      %s78 = sphi 0, %s64
      %s82 = sphi 0, %s82
      %s84 = sphi 0, %s82
      %s85 = sphi 0, %s84
      %s99 = sphi 0, %s85
      %s107 = sphi 0, %s109
      %s110 = sphi 0, %s107
      %s111 = sphi 0, %s110
      %s127 = sphi 0, %s111
    $region4: #{tpu_custom_call.1} parent=1 // loop_header_branch
      %16 = sbr.rel (%p14) target = $region8
    $region5: #{tpu_custom_call.1} parent=1 // loop_body
      %s18 = ssub.s32 %s13, 1
      %s19 = ssub.s32 %s13, 2
      %s26 = sadd.s32 1, %s21
      %p27 = scmp.ge.s32.totalorder %s26, 1
      %s28 = scalar_select %p27, 0, %s26
      %s29 = sadd.s32 1, %s20
      %s30 = scalar_select %p27, %s29, %s20
      %p31 = scmp.ge.s32.totalorder %s30, 2
      %s32 = scalar_select %p31, 0, %s30
      %s33 = ssub.s32 %s20, %s32
      %s34 = ssub.s32 %s21, %s28
      %s35 = sor.u32 %s33, %s34
      %p36 = scmp.eq.s32.totalorder %s35, 0
      %s38 = sadd.s32 %s37, 1
      %s39 = scalar_select %p36, %s37, %s38
      %p42 = pneg %p36
      %p43 = scmp.eq.s32.totalorder %s13, 1
      %p44 = por %p42, %p43
      %p45 = scmp.ne.s32.totalorder %s37, %s40
      %p46 = scmp.eq.s32.totalorder %s13, 0
      %p47 = por %p45, %p46
      %p48 = scmp.ne.s32.totalorder %s37, %s40
      %p49 = scmp.eq.s32.totalorder %s18, 1
      %p50 = por %p48, %p49
      %p51 = scmp.ne.s32.totalorder %s40, %s41
      %p52 = scmp.eq.s32.totalorder %s18, 0
      %p53 = por %p51, %p52
      %p54 = scmp.ne.s32.totalorder %s40, %s41
      %p55 = scmp.eq.s32.totalorder %s19, 1
      %p56 = por %p54, %p55
      %p58 = scmp.ne.s32.totalorder %s41, %s57
      %p59 = scmp.eq.s32.totalorder %s19, 0
      %p60 = por %p58, %p59
      %s62 = sadd.s32 %s61, 1
      %p65 = scmp.eq.s32.totalorder %s13, 1
      %p66 = scmp.ne.s32.totalorder %s61, %s63
      %p67 = scmp.eq.s32.totalorder %s13, 0
      %p68 = por %p66, %p67
      %p69 = scmp.ne.s32.totalorder %s61, %s63
      %p70 = scmp.eq.s32.totalorder %s18, 1
      %p71 = por %p69, %p70
      %p72 = scmp.ne.s32.totalorder %s63, %s64
      %p73 = scmp.eq.s32.totalorder %s18, 0
      %p74 = por %p72, %p73
      %p75 = scmp.ne.s32.totalorder %s63, %s64
      %p76 = scmp.eq.s32.totalorder %s19, 1
      %p77 = por %p75, %p76
      %p79 = scmp.ne.s32.totalorder %s64, %s78
      %p80 = scmp.eq.s32.totalorder %s19, 0
      %p81 = por %p79, %p80
      %s83 = sadd.s32 %s82, 1
      %p86 = scmp.eq.s32.totalorder %s13, 1
      %p87 = scmp.ne.s32.totalorder %s82, %s84
      %p88 = scmp.eq.s32.totalorder %s13, 0
      %p89 = por %p87, %p88
      %p90 = scmp.ne.s32.totalorder %s82, %s84
      %p91 = scmp.eq.s32.totalorder %s18, 1
      %p92 = por %p90, %p91
      %p93 = scmp.ne.s32.totalorder %s84, %s85
      %p94 = scmp.eq.s32.totalorder %s18, 0
      %p95 = por %p93, %p94
      %p96 = scmp.ne.s32.totalorder %s84, %s85
      %p97 = scmp.eq.s32.totalorder %s19, 1
      %p98 = por %p96, %p97
      %p100 = scmp.ne.s32.totalorder %s85, %s99
      %p101 = scmp.eq.s32.totalorder %s19, 0
      %p102 = por %p100, %p101
      %s103 = ssub.s32 %s20, %s32
      %s104 = ssub.s32 %s21, %s28
      %s105 = sor.u32 %s103, %s104
      %p106 = scmp.eq.s32.totalorder %s105, 0
      %s108 = sadd.s32 %s107, 1
      %s109 = scalar_select %p106, %s107, %s108
      %p112 = pneg %p106
      %p113 = scmp.eq.s32.totalorder %s13, 1
      %p114 = por %p112, %p113
      %p115 = scmp.ne.s32.totalorder %s107, %s110
      %p116 = scmp.eq.s32.totalorder %s13, 0
      %p117 = por %p115, %p116
      %p118 = scmp.ne.s32.totalorder %s107, %s110
      %p119 = scmp.eq.s32.totalorder %s18, 1
      %p120 = por %p118, %p119
      %p121 = scmp.ne.s32.totalorder %s110, %s111
      %p122 = scmp.eq.s32.totalorder %s18, 0
      %p123 = por %p121, %p122
      %p124 = scmp.ne.s32.totalorder %s110, %s111
      %p125 = scmp.eq.s32.totalorder %s19, 1
      %p126 = por %p124, %p125
      %p128 = scmp.ne.s32.totalorder %s111, %s127
      %p129 = scmp.eq.s32.totalorder %s19, 0
      %p130 = por %p128, %p129
      %p131 = scmp.le.s32.totalorder 1, %s13
      %p132 = scmp.lt.s32.totalorder %s13, 3
      %p133 = pnand %p131, %p132
      %p134 = pneg %p133
      // Predicated region
      $region9: #{tpu_custom_call.1} parent=5 // pred_check
        _
      $region10: #{tpu_custom_call.1} parent=5 // pred_check_branch
        %136 = sbr.rel (%p133) target = $region12
      $region11: #{tpu_custom_call.1} parent=5 // pred_region
        %s137 = ssub.s32 %s13, 1
        // Predicated region
        $region13: #{tpu_custom_call.1} parent=11 // pred_check
          %p138 = pneg %p74
        $region14: #{tpu_custom_call.1} parent=11 // pred_check_branch
          %140 = sbr.rel (%p138) target = $region16
        $region15: #{tpu_custom_call.1} parent=11 // pred_region
          %s142 = ssub.s32 2048, 2048
          %143 = vsyncadd [#allocation3], %s142
          %s144 = sshll.u32 [#allocation2], 4
          %s145 = int_to_ptr.vmem [resolvable:$true] %s144
          %150 = dma.hbm_to_vmem [thread:$0]  %s1, 2048, %s145, [#allocation3], 128, 128, 8
        $region16: #{tpu_custom_call.1} parent=11 // pred_fallthru
          _
        // Predicated region
        $region17: #{tpu_custom_call.1} parent=11 // pred_check
          %p151 = pneg %p95
        $region18: #{tpu_custom_call.1} parent=11 // pred_check_branch
          %153 = sbr.rel (%p151) target = $region20
        $region19: #{tpu_custom_call.1} parent=11 // pred_region
          _
        $region20: #{tpu_custom_call.1} parent=11 // pred_fallthru
          _
      $region12: #{tpu_custom_call.1} parent=5 // pred_fallthru
        _
      %p154 = scmp.lt.s32.totalorder %s13, 2
      // Predicated region
      $region21: #{tpu_custom_call.1} parent=5 // pred_check
        %p155 = pneg %p154
      $region22: #{tpu_custom_call.1} parent=5 // pred_check_branch
        %157 = sbr.rel (%p155) target = $region24
      $region23: #{tpu_custom_call.1} parent=5 // pred_region
        // Predicated region
        $region25: #{tpu_custom_call.1} parent=23 // pred_check
          %p158 = pneg %p47
        $region26: #{tpu_custom_call.1} parent=23 // pred_check_branch
          %160 = sbr.rel (%p158) target = $region28
        $region27: #{tpu_custom_call.1} parent=23 // pred_region
          %p161 = scmp.lt.s32.totalorder %s20, 1
          %s162 = scalar_select %p161, %s20, 1
          %p163 = scmp.lt.s32.totalorder %s21, 0
          %s164 = scalar_select %p163, %s21, 0
          %s165 = smul.addr %s164, 3
          %s166 = smul.addr %s162, 3
          %s167 = sadd.s32 %s165, %s166
          %s168 = smul.addr %s167, 8
          %s169 = scalar_lea.vmem %s0, %s168
        $region28: #{tpu_custom_call.1} parent=23 // pred_fallthru
          _
      $region24: #{tpu_custom_call.1} parent=5 // pred_fallthru
        _
      %p170 = scmp.le.s32.totalorder 1, %s13
      %p171 = scmp.lt.s32.totalorder %s13, 3
      %p172 = pnand %p170, %p171
      %p173 = pneg %p172
      // Predicated region
      $region29: #{tpu_custom_call.1} parent=5 // pred_check
        _
      $region30: #{tpu_custom_call.1} parent=5 // pred_check_branch
        %175 = sbr.rel (%p172) target = $region32
      $region31: #{tpu_custom_call.1} parent=5 // pred_region
        %s176 = ssub.s32 %s13, 1
        // Predicated region
        $region33: #{tpu_custom_call.1} parent=31 // pred_check
          %p177 = pneg %p74
        $region34: #{tpu_custom_call.1} parent=31 // pred_check_branch
          %179 = sbr.rel (%p177) target = $region36
        $region35: #{tpu_custom_call.1} parent=31 // pred_region
          %180 = dma.done [#allocation3], 2048
        $region36: #{tpu_custom_call.1} parent=31 // pred_fallthru
          _
        %p181 = scmp.lt.s32.totalorder %s22, 1
        %s182 = scalar_select %p181, %s22, 1
        %p183 = scmp.lt.s32.totalorder %s23, 0
        %s184 = scalar_select %p183, %s23, 0
        %s185 = smul.addr %s184, 3
        %s186 = smul.addr %s182, 3
        %s187 = sadd.s32 %s185, %s186
        %s188 = smul.addr %s187, 8
        %s189 = scalar_lea.vmem %s0, %s188
        %p190 = pneg %p53
        %p191 = pneg %p50
        %p192 = pneg %p74
        %p193 = pneg %p71
        %p194 = pneg %p95
        %p195 = pneg %p92
        %p196 = pneg %p123
        %p197 = pneg %p120
        %s198 = sand.u32 %s110, 1
        %s199 = scalar_lea.sflag [#allocation4], %s198
        %s200 = sand.u32 %s110, 1
        %s201 = smul.addr %s200, 16
        %s202 = scalar_lea.vmem [#allocation5], %s201
        %p203 = scmp.lt.s32.totalorder %s22, 1
        %s204 = scalar_select %p203, %s22, 1
        %p205 = scmp.lt.s32.totalorder %s23, 0
        %s206 = scalar_select %p205, %s23, 0
        %s207 = smul.addr %s206, 3
        %s208 = smul.addr %s204, 3
        %s209 = sadd.s32 %s207, %s208
        %s210 = smul.addr %s209, 8
        %s211 = scalar_lea.vmem %s0, %s210
        %s212 = smul.u32 2, %s23
        %v214 = vld [vmem:[%s211] sm:$0xff]
        %v215 = vld [vmem:[%s211 + $0x8] sm:$0xff]
        %v216 = vld [vmem:[%s211 + $0x1] sm:$0xff]
        %v217 = vld [vmem:[%s211 + $0x9] sm:$0xff]
        %v218 = vld [vmem:[%s211 + $0x2] sm:$0xff]
        %v219 = vld [vmem:[%s211 + $0xa] sm:$0xff]
        %v220 = vld [vmem:[%s211 + $0x3] sm:$0xff]
        %v221 = vld [vmem:[%s211 + $0xb] sm:$0xff]
        %224 = vrot.lane.b32.xlu0 %v216, 32
        %v225 = vpop.permute.xlu0 %224
        %226 = vrot.lane.b32.xlu0 %v217, 32
        %v227 = vpop.permute.xlu0 %226
        %232 = vrot.lane.b32.xlu0 %v218, 64
        %v233 = vpop.permute.xlu0 %232
        %234 = vrot.lane.b32.xlu0 %v219, 64
        %v235 = vpop.permute.xlu0 %234
        %240 = vrot.lane.b32.xlu0 %v220, 96
        %v241 = vpop.permute.xlu0 %240
        %242 = vrot.lane.b32.xlu0 %v221, 96
        %v243 = vpop.permute.xlu0 %242
        %vm246 = vcmask 261120
        %v247 = vsel %vm246, %v214, %v225
        %v248 = vsel %vm246, %v215, %v227
        %vm249 = vcmask 523264
        %v250 = vsel %vm249, %v247, %v233
        %v251 = vsel %vm249, %v248, %v235
        %vm252 = vcmask 785408
        %v253 = vsel %vm252, %v250, %v241
        %v254 = vsel %vm252, %v251, %v243
        %v255 = vpack.c.bf16 %v254, %v253
        %v256 = vld [vmem:[#allocation2] sm:$0xff]
        %v257 = vld [vmem:[#allocation2 + $0x8] sm:$0xff]
        %v258 = vld [vmem:[#allocation2 + $0x10] sm:$0xff]
        %v259 = vld [vmem:[#allocation2 + $0x18] sm:$0xff]
        %v260 = vld [vmem:[#allocation2 + $0x20] sm:$0xff]
        %v261 = vld [vmem:[#allocation2 + $0x28] sm:$0xff]
        %v262 = vld [vmem:[#allocation2 + $0x30] sm:$0xff]
        %v263 = vld [vmem:[#allocation2 + $0x38] sm:$0xff]
        %v264 = vld [vmem:[#allocation2 + $0x40] sm:$0xff]
        %v265 = vld [vmem:[#allocation2 + $0x48] sm:$0xff]
        %v266 = vld [vmem:[#allocation2 + $0x50] sm:$0xff]
        %v267 = vld [vmem:[#allocation2 + $0x58] sm:$0xff]
        %v268 = vld [vmem:[#allocation2 + $0x60] sm:$0xff]
        %v269 = vld [vmem:[#allocation2 + $0x68] sm:$0xff]
        %v270 = vld [vmem:[#allocation2 + $0x70] sm:$0xff]
        %v271 = vld [vmem:[#allocation2 + $0x78] sm:$0xff]
        %v288 = vunpack.c.l.b16 %v256
        %v289 = vunpack.c.h.b16 %v256
        %v290 = vunpack.c.l.b16 %v257
        %v291 = vunpack.c.h.b16 %v257
        %v292 = vunpack.c.l.b16 %v258
        %v293 = vunpack.c.h.b16 %v258
        %v294 = vunpack.c.l.b16 %v259
        %v295 = vunpack.c.h.b16 %v259
        %v296 = vunpack.c.l.b16 %v260
        %v297 = vunpack.c.h.b16 %v260
        %v298 = vunpack.c.l.b16 %v261
        %v299 = vunpack.c.h.b16 %v261
        %v300 = vunpack.c.l.b16 %v262
        %v301 = vunpack.c.h.b16 %v262
        %v302 = vunpack.c.l.b16 %v263
        %v303 = vunpack.c.h.b16 %v263
        %v304 = vunpack.c.l.b16 %v264
        %v305 = vunpack.c.h.b16 %v264
        %v306 = vunpack.c.l.b16 %v265
        %v307 = vunpack.c.h.b16 %v265
        %v308 = vunpack.c.l.b16 %v266
        %v309 = vunpack.c.h.b16 %v266
        %v310 = vunpack.c.l.b16 %v267
        %v311 = vunpack.c.h.b16 %v267
        %v312 = vunpack.c.l.b16 %v268
        %v313 = vunpack.c.h.b16 %v268
        %v314 = vunpack.c.l.b16 %v269
        %v315 = vunpack.c.h.b16 %v269
        %v316 = vunpack.c.l.b16 %v270
        %v317 = vunpack.c.h.b16 %v270
        %v318 = vunpack.c.l.b16 %v271
        %v319 = vunpack.c.h.b16 %v271
        %v320 = vpack.c.b16 %v290, %v288
        %v321 = vpack.c.b16 %v291, %v289
        %v322 = vpack.c.b16 %v294, %v292
        %v323 = vpack.c.b16 %v295, %v293
        %v324 = vpack.c.b16 %v298, %v296
        %v325 = vpack.c.b16 %v299, %v297
        %v326 = vpack.c.b16 %v302, %v300
        %v327 = vpack.c.b16 %v303, %v301
        %v328 = vpack.c.b16 %v306, %v304
        %v329 = vpack.c.b16 %v307, %v305
        %v330 = vpack.c.b16 %v310, %v308
        %v331 = vpack.c.b16 %v311, %v309
        %v332 = vpack.c.b16 %v314, %v312
        %v333 = vpack.c.b16 %v315, %v313
        %v334 = vpack.c.b16 %v318, %v316
        %v335 = vpack.c.b16 %v319, %v317
        %352 = vmatprep.subr.bf16.mxu0 %v335
        %353 = vmatpush1.bf16.msra.mxu0 %v334
        %354 = vmatprep.subr.bf16.mxu0 %v333
        %355 = vmatpush1.bf16.msra.mxu0 %v332
        %356 = vmatprep.subr.bf16.mxu0 %v331
        %357 = vmatpush1.bf16.msra.mxu0 %v330
        %358 = vmatprep.subr.bf16.mxu0 %v329
        %359 = vmatpush1.bf16.msra.mxu0 %v328
        %360 = vmatprep.subr.bf16.mxu0 %v327
        %361 = vmatpush1.bf16.msra.mxu0 %v326
        %362 = vmatprep.subr.bf16.mxu0 %v325
        %363 = vmatpush1.bf16.msra.mxu0 %v324
        %364 = vmatprep.subr.bf16.mxu0 %v323
        %365 = vmatpush1.bf16.msra.mxu0 %v322
        %366 = vmatprep.subr.bf16.mxu0 %v321
        %367 = vmatpush1.bf16.msra.mxu0 %v320
        %368 = vmatprep.subr.bf16.mxu0 0
        %369 = vmatpush2.bf16.msra.mxu0 0
        %370 = vmatprep.subr.bf16.mxu0 0
        %371 = vmatpush2.bf16.msra.mxu0 0
        %372 = vmatprep.subr.bf16.mxu0 0
        %373 = vmatpush2.bf16.msra.mxu0 0
        %374 = vmatprep.subr.bf16.mxu0 0
        %375 = vmatpush2.bf16.msra.mxu0 0
        %376 = vmatprep.subr.bf16.mxu0 0
        %377 = vmatpush2.bf16.msra.mxu0 0
        %378 = vmatprep.subr.bf16.mxu0 0
        %379 = vmatpush2.bf16.msra.mxu0 0
        %380 = vmatprep.subr.bf16.mxu0 0
        %381 = vmatpush2.bf16.msra.mxu0 0
        %382 = vmatprep.subr.bf16.mxu0 0
        %383 = vmatpush2.bf16.msra.mxu0 0
        %384 = vmatprep.mubr.bf16.mxu0 0
        %385 = vmatmul.mubr.bf16.gmra.mxu0 %v255
        %v386 = vpop.f32.mrf.mxu0
        %v387 = vadd.f32 0.0, %v386
        %v388 = vpop.f32.mrf.mxu0
        %v389 = vadd.f32 0.0, %v388
        %v390 = vpop.f32.mrf.mxu0
        %v391 = vadd.f32 0.0, %v390
        %v392 = vpop.f32.mrf.mxu0
        %v393 = vadd.f32 0.0, %v392
        %394 = vdwg.mxu0
        %v395 = vmul.f32 %v387, %v387
        %v396 = vmul.f32 %v391, %v391
        %v397 = vmul.f32 %v389, %v389
        %v398 = vmul.f32 %v393, %v393
        %v399 = vadd.f32 %v395, %v397
        %v400 = vadd.f32 %v396, %v398
        %v401 = vrsqrt.pop %v399
        %v402 = vmul.f32 %v399, %v401
        %vm403 = vcmp.eq.f32.partialorder %v399, inf
        %v404 = vsel %vm403, %v399, %v402
        %vm405 = vcmp.eq.f32.partialorder %v399, 0.0
        %v406 = vand.u32 %v399, 2147483648
        %v407 = vsel %vm405, %v406, %v404
        %v408 = vrsqrt.pop %v400
        %v409 = vmul.f32 %v400, %v408
        %vm410 = vcmp.eq.f32.partialorder %v400, inf
        %v411 = vsel %vm410, %v400, %v409
        %vm412 = vcmp.eq.f32.partialorder %v400, 0.0
        %v413 = vand.u32 %v400, 2147483648
        %v414 = vsel %vm412, %v413, %v411
        %v415 = vpack.c.bf16 %v414, %v407
        %v416 = vld [vmem:[%s2] sm:$0xf]
        %v417 = vld [vmem:[%s2 + $0x4] sm:$0xf]
        %v418 = vld [vmem:[%s2 + $0x8] sm:$0xf]
        %v419 = vld [vmem:[%s2 + $0xc] sm:$0xf]
        %v420 = vld [vmem:[%s2 + $0x10] sm:$0xf]
        %v421 = vld [vmem:[%s2 + $0x14] sm:$0xf]
        %v422 = vld [vmem:[%s2 + $0x18] sm:$0xf]
        %v423 = vld [vmem:[%s2 + $0x1c] sm:$0xf]
        %v424 = vld [vmem:[%s2 + $0x20] sm:$0xf]
        %v425 = vld [vmem:[%s2 + $0x24] sm:$0xf]
        %v426 = vld [vmem:[%s2 + $0x28] sm:$0xf]
        %v427 = vld [vmem:[%s2 + $0x2c] sm:$0xf]
        %v428 = vld [vmem:[%s2 + $0x30] sm:$0xf]
        %v429 = vld [vmem:[%s2 + $0x34] sm:$0xf]
        %v430 = vld [vmem:[%s2 + $0x38] sm:$0xf]
        %v431 = vld [vmem:[%s2 + $0x3c] sm:$0xf]
        %v448 = vunpack.c.l.b16 %v416
        %v449 = vunpack.c.l.b16 %v417
        %v450 = vunpack.c.l.b16 %v418
        %v451 = vunpack.c.l.b16 %v419
        %v452 = vunpack.c.l.b16 %v420
        %v453 = vunpack.c.l.b16 %v421
        %v454 = vunpack.c.l.b16 %v422
        %v455 = vunpack.c.l.b16 %v423
        %v456 = vunpack.c.l.b16 %v424
        %v457 = vunpack.c.l.b16 %v425
        %v458 = vunpack.c.l.b16 %v426
        %v459 = vunpack.c.l.b16 %v427
        %v460 = vunpack.c.l.b16 %v428
        %v461 = vunpack.c.l.b16 %v429
        %v462 = vunpack.c.l.b16 %v430
        %v463 = vunpack.c.l.b16 %v431
        %v464 = vpack.c.b16 %v449, %v448
        %v465 = vpack.c.b16 %v451, %v450
        %v466 = vpack.c.b16 %v453, %v452
        %v467 = vpack.c.b16 %v455, %v454
        %v468 = vpack.c.b16 %v457, %v456
        %v469 = vpack.c.b16 %v459, %v458
        %v470 = vpack.c.b16 %v461, %v460
        %v471 = vpack.c.b16 %v463, %v462
        %480 = vmatprep.subr.bf16.mxu0 0
        %481 = vmatpush1.bf16.msra.mxu0 %v471
        %482 = vmatprep.subr.bf16.mxu0 0
        %483 = vmatpush1.bf16.msra.mxu0 %v470
        %484 = vmatprep.subr.bf16.mxu0 0
        %485 = vmatpush1.bf16.msra.mxu0 %v469
        %486 = vmatprep.subr.bf16.mxu0 0
        %487 = vmatpush1.bf16.msra.mxu0 %v468
        %488 = vmatprep.subr.bf16.mxu0 0
        %489 = vmatpush1.bf16.msra.mxu0 %v467
        %490 = vmatprep.subr.bf16.mxu0 0
        %491 = vmatpush1.bf16.msra.mxu0 %v466
        %492 = vmatprep.subr.bf16.mxu0 0
        %493 = vmatpush1.bf16.msra.mxu0 %v465
        %494 = vmatprep.subr.bf16.mxu0 0
        %495 = vmatpush1.bf16.msra.mxu0 %v464
        %496 = vmatprep.subr.bf16.mxu0 0
        %497 = vmatpush2.bf16.msra.mxu0 0
        %498 = vmatprep.subr.bf16.mxu0 0
        %499 = vmatpush2.bf16.msra.mxu0 0
        %500 = vmatprep.subr.bf16.mxu0 0
        %501 = vmatpush2.bf16.msra.mxu0 0
        %502 = vmatprep.subr.bf16.mxu0 0
        %503 = vmatpush2.bf16.msra.mxu0 0
        %504 = vmatprep.subr.bf16.mxu0 0
        %505 = vmatpush2.bf16.msra.mxu0 0
        %506 = vmatprep.subr.bf16.mxu0 0
        %507 = vmatpush2.bf16.msra.mxu0 0
        %508 = vmatprep.subr.bf16.mxu0 0
        %509 = vmatpush2.bf16.msra.mxu0 0
        %510 = vmatprep.subr.bf16.mxu0 0
        %511 = vmatpush2.bf16.msra.mxu0 0
        %512 = vmatprep.mubr.bf16.mxu0 0
        %513 = vmatmul.mubr.bf16.gmra.mxu0 %v415
        %v514 = vpop.f32.mrf.mxu0
        %v515 = vadd.f32 0.0, %v514
        %v516 = vpop.f32.mrf.mxu0
        %v517 = vpop.f32.mrf.mxu0
        %v518 = vadd.f32 0.0, %v517
        %v519 = vpop.f32.mrf.mxu0
        %520 = vdwg.mxu0
        %v521 = vmax.f32 %v515, 1e-05
        %v522 = vmax.f32 %v518, 1e-05
        %v523 = vlog2.pop %v521
        %v524 = vmul.f32 %v523, 0.6931472
        %v525 = vlog2.pop %v522
        %v526 = vmul.f32 %v525, 0.6931472
        %v527 = vmul.f32 %v524, 0.4342945
        %v528 = vmul.f32 %v526, 0.4342945
        %529 = vst [vmem:[%s202] sm:$0xff] %v527
        %530 = vst [vmem:[%s202 + $0x8] sm:$0xff] %v528
        %s531 = sand.u32 %s110, 1
        %s532 = scalar_lea.sflag [#allocation4], %s531
        %s533 = sand.u32 %s110, 1
        %s534 = smul.addr %s533, 16
        %s535 = scalar_lea.vmem [#allocation5], %s534
        // Predicated region
        $region37: #{tpu_custom_call.1} parent=31 // pred_check
          %p536 = pneg %p120
        $region38: #{tpu_custom_call.1} parent=31 // pred_check_branch
          %538 = sbr.rel (%p536) target = $region40
        $region39: #{tpu_custom_call.1} parent=31 // pred_region
          %s539 = smul.u32 2, %s23
          %s541 = ssub.s32 256, 256
          %542 = vsyncadd %s532, %s541
          %s543 = smul.addr %s22, 2
          %s544 = sadd.s32 %s539, %s543
          %s545 = smul.addr %s544, 128
          %s546 = scalar_lea.hbm %s3, %s545
          %s547 = sshll.u32 %s535, 4
          %s548 = int_to_ptr.vmem [resolvable:$true] %s547
          %553 = dma.vmem_to_hbm [thread:$0]  %s548, 256, %s546, %s532, 128, 128, 8
        $region40: #{tpu_custom_call.1} parent=31 // pred_fallthru
          _
      $region32: #{tpu_custom_call.1} parent=5 // pred_fallthru
        _
      %p554 = scmp.le.s32.totalorder 2, %s13
      // Predicated region
      $region41: #{tpu_custom_call.1} parent=5 // pred_check
        %p555 = pneg %p554
      $region42: #{tpu_custom_call.1} parent=5 // pred_check_branch
        %557 = sbr.rel (%p555) target = $region44
      $region43: #{tpu_custom_call.1} parent=5 // pred_region
        %s558 = ssub.s32 %s13, 2
        // Predicated region
        $region45: #{tpu_custom_call.1} parent=43 // pred_check
          %p559 = pneg %p126
        $region46: #{tpu_custom_call.1} parent=43 // pred_check_branch
          %561 = sbr.rel (%p559) target = $region48
        $region47: #{tpu_custom_call.1} parent=43 // pred_region
          %s562 = sand.u32 %s111, 1
          %s563 = scalar_lea.sflag [#allocation4], %s562
          %s564 = sand.u32 %s111, 1
          %s565 = smul.addr %s564, 16
          %s566 = scalar_lea.vmem [#allocation5], %s565
          %567 = dma.done %s563, 256
        $region48: #{tpu_custom_call.1} parent=43 // pred_fallthru
          _
      $region44: #{tpu_custom_call.1} parent=5 // pred_fallthru
        _
    $region6: #{tpu_custom_call.1} parent=1 // loop_footer
      %s17 = sadd.s32 1, %s13
    $region7: #{tpu_custom_call.1} parent=1 // loop_footer_branch
      %12 = sbr.rel target = $region3
    $region8: #{tpu_custom_call.1} parent=1 // loop_exit
      _
    %568 = vsyncpa [#allocation3], 1
    %s569 = scalar_lea.sflag [#allocation3], 1
    %570 = vsyncpa %s569, 1
    %571 = vsyncpa [#allocation4], 1
    %s572 = scalar_lea.sflag [#allocation4], 1
    %573 = vsyncpa %s572, 1

</llo_original>
